<compile_context>
chip_gen: v7x
topology: tpu7x:2x2x1
jax: 0.10.0
libtpu: 0.0.40
codegen_flags: <defaults>
</compile_context>

<pallas_src>
import math

import jax
import jax.numpy as jnp
from jax.experimental import pallas as pl
from jax.experimental.pallas import tpu as pltpu


def _dice_sums_kernel(probs_ref, mask_ref, num_ref, den1_ref, den2_ref):
    """Accumulate per-(class, batch, lane) partial sums over one dense tile."""
    t = pl.program_id(1)  # reduction over spatial tiles within this split

    @pl.when(t == 0)
    def _():
        num_ref[...] = jnp.zeros_like(num_ref)
        den1_ref[...] = jnp.zeros_like(den1_ref)
        den2_ref[...] = jnp.zeros_like(den2_ref)

    labels = mask_ref[...].astype(jnp.int32)            # (N, tr, 128), one read
    n_cls = probs_ref.shape[1]

    # Foreground classes only (class 0 never contributes to the loss).  Each
    # class costs one compare + select + mul + three sublane reductions on
    # dense (tr, 128) vregs; no iota, no onehot tensor, no cross-lane reduce.
    for i in range(1, n_cls):
        p_i = probs_ref[:, i].astype(jnp.float32)        # (N, tr, 128)
        hit = labels == i                                # (N, tr, 128) bool
        num_ref[0, i] += jnp.sum(jnp.where(hit, p_i, 0.0), axis=1)       # (N, 128)
        den1_ref[0, i] += jnp.sum(p_i * p_i, axis=1)                     # (N, 128)
        den2_ref[0, i] += jnp.sum(hit.astype(jnp.float32), axis=1)       # (N, 128)


def _vmem_config():
    """(working-set budget, vmem_limit_bytes) sized per TPU generation."""
    kind = ""
    try:
        kind = jax.devices()[0].device_kind.lower()
    except Exception:
        pass
    if "v7" in kind or "7x" in kind:
        return 26 << 20, 44 << 20        # 64 MiB physical VMEM per TensorCore
    if any(v in kind for v in ("v4", "v5", "v6")):
        return 56 << 20, 96 << 20        # 128 MiB physical VMEM
    return 26 << 20, 44 << 20            # unknown: assume the small-VMEM chip


def dice_loss_multiclass(output, mask, *, tile_rows=None):
    """output: (N, C, D, H, W) class probabilities (float32 / bfloat16).
    mask: (N, 1, D, H, W) or (N, D, H, W) integer class labels (any int dtype).
    Returns the per-batch DICE loss (scalar when N == 1)."""
    N, C = output.shape[0], output.shape[1]
    S = int(math.prod(output.shape[2:]))
    ip = output.dtype.itemsize
    im = mask.dtype.itemsize

    # Sublane granularity of the (rows, 128) slabs for the packed input dtypes
    # (f32 -> 8, bf16 -> 16, int8 -> 32 rows per native tile).
    gran = max(8, 32 // ip, 32 // im)
    rows = pl.cdiv(S, 128)                        # 128-lane rows of real data

    budget, vmem_limit = _vmem_config()
    if tile_rows is None:
        # Exact dense-layout footprint per row of 128 lanes: double-buffered
        # input blocks plus ~4 f32 in-kernel temporaries per probs element.
        per_row = (2 * (N * C * 128 * ip + N * 128 * im)
                   + 4 * N * C * 128 * 4 + N * 128 * 4)
        tile_rows = max(gran, budget // per_row // gran * gran)
        if tile_rows < rows and rows % gran == 0:
            # Prefer a tile height that avoids the zero-padding pass entirely:
            # rows must split into a single tile or an even number of tiles.
            best = None
            for tr in range(tile_rows, max(gran, tile_rows // 2) - 1, -gran):
                if rows % tr == 0:
                    nt = rows // tr
                    if nt == 1 or nt % 2 == 0:
                        best = tr
                        break
                    if best is None:
                        best = tr
            if best is not None:
                tile_rows = best
    tile_rows = int(max(gran, (int(tile_rows) // gran) * gran))
    tile_rows = min(tile_rows, pl.cdiv(rows, gran) * gran)

    num_tiles = pl.cdiv(rows, tile_rows)
    # Always give v7x's two TensorCores their own partial accumulator whenever
    # there is more than one tile (ceil split; harmless on v5e/v6e).
    nsplit = 2 if num_tiles >= 2 else 1
    tiles_per_split = pl.cdiv(num_tiles, nsplit)
    rows_total = nsplit * tiles_per_split * tile_rows
    s_total = rows_total * 128

    # Layout-free collapse of (D, H, W) onto the lane axis, then a layout-free
    # split into sublane-dense (rows, 128) slabs.
    probs2 = output.reshape(N, C, S)
    labels2 = mask.reshape(N, S)
    if s_total != S:
        # Zero padding contributes only to class 0, which is dropped in the
        # epilogue.  Costs one extra copy pass, only for tile-unaligned sizes.
        probs2 = jnp.pad(probs2, ((0, 0), (0, 0), (0, s_total - S)))
        labels2 = jnp.pad(labels2, ((0, 0), (0, s_total - S)))
    probs4 = probs2.reshape(N, C, rows_total, 128)
    labels3 = labels2.reshape(N, rows_total, 128)

    acc_shape = jax.ShapeDtypeStruct((nsplit, C, N, 128), jnp.float32)
    acc_spec = pl.BlockSpec((1, C, N, 128), lambda s, t: (s, 0, 0, 0))

    nbytes = (N * C * s_total * ip + N * s_total * im
              + 3 * nsplit * C * N * 128 * 4)

    num, den1, den2 = pl.pallas_call(
        _dice_sums_kernel,
        grid=(nsplit, tiles_per_split),
        in_specs=[
            pl.BlockSpec((N, C, tile_rows, 128),
                         lambda s, t: (0, 0, s * tiles_per_split + t, 0)),
            pl.BlockSpec((N, tile_rows, 128),
                         lambda s, t: (0, s * tiles_per_split + t, 0)),
        ],
        out_specs=[acc_spec, acc_spec, acc_spec],
        out_shape=[acc_shape, acc_shape, acc_shape],
        compiler_params=pltpu.CompilerParams(
            dimension_semantics=("parallel", "arbitrary"),
            vmem_limit_bytes=vmem_limit),
        cost_estimate=pl.CostEstimate(
            flops=5 * (C - 1) * N * s_total, transcendentals=0,
            bytes_accessed=nbytes),
    )(probs4, labels3)

    # Tiny epilogue: combine core splits + lane partials, drop class 0.
    num = num.sum(axis=(0, 3))[1:]        # (C-1, N)
    den1 = den1.sum(axis=(0, 3))[1:]
    den2 = den2.sum(axis=(0, 3))[1:]
    eps = 1e-7
    dice = -2.0 * (num + eps) / (den1 + den2 + eps)
    loss = jnp.sum(dice, axis=0) / (C - 1)
    # TODO(synk): torch.squeeze() also drops size-1 *spatial* dims (changing
    # the reduction axes in degenerate shapes); only the standard D,H,W > 1
    # case is replicated here.
    if N == 1:
        loss = loss[0]
    return loss


def _reference(output, mask):
    """Pure-JAX mirror of the PyTorch forward."""
    num_classes = output.shape[1]
    loss = 0.0
    for i in range(1, num_classes):
        probs = jnp.squeeze(output[:, i, :, :, :]).astype(jnp.float32)
        mask_i = jnp.squeeze(mask == i).astype(jnp.float32)
        num = jnp.sum(probs * mask_i, axis=(-1, -2, -3))
        den1 = jnp.sum(probs * probs, axis=(-1, -2, -3))
        den2 = jnp.sum(mask_i * mask_i, axis=(-1, -2, -3))
        eps = 1e-7
        loss = loss + (-2.0) * (num + eps) / (den1 + den2 + eps)
    return loss / (num_classes - 1)


if __name__ == "__main__":
    key = jax.random.PRNGKey(0)
    k1, k2 = jax.random.split(key)

    N, C, D, H, W = 2, 4, 4, 32, 32
    logits = jax.random.normal(k1, (N, C, D, H, W), dtype=jnp.float32)
    probs = jax.nn.softmax(logits, axis=1)                 # class probabilities
    mask = jax.random.randint(k2, (N, 1, D, H, W), 0, C, dtype=jnp.int32)

    ref = jax.block_until_ready(_reference(probs, mask))

    # auto tiling (single tile for this small demo)
    loss = jax.block_until_ready(dice_loss_multiclass(probs, mask))
    assert jnp.allclose(loss, ref, atol=1e-5, rtol=1e-5), (loss, ref)

    # forced multi-tile: exercises accumulation + the 2-way core split
    loss2 = jax.block_until_ready(dice_loss_multiclass(probs, mask, tile_rows=8))
    assert jnp.allclose(loss2, ref, atol=1e-5, rtol=1e-5), (loss2, ref)

    # tile that does not divide the row count: exercises the zero-pad path
    loss3 = jax.block_until_ready(dice_loss_multiclass(probs, mask, tile_rows=24))
    assert jnp.allclose(loss3, ref, atol=1e-5, rtol=1e-5), (loss3, ref)

    # int8 labels stream natively (4x less mask traffic; cast in-register)
    loss4 = jax.block_until_ready(
        dice_loss_multiclass(probs, mask.astype(jnp.int8)))
    assert jnp.allclose(loss4, ref, atol=1e-5, rtol=1e-5), (loss4, ref)

    # bf16 probabilities stream natively and are upcast in-register
    probs_bf16 = probs.astype(jnp.bfloat16)
    ref_bf16 = jax.block_until_ready(_reference(probs_bf16, mask))
    loss5 = jax.block_until_ready(dice_loss_multiclass(probs_bf16, mask))
    assert jnp.allclose(loss5, ref_bf16, atol=1e-4, rtol=1e-4), (loss5, ref_bf16)

    print("KERNEL_OK")
</pallas_src>

<mosaic_0001>
module attributes {stable_mosaic.version = 11 : i64} {
  func.func @_dice_sums_kernel(%arg0: i32, %arg1: i32, %arg2: memref<2x4x32x128xf32, #tpu.memory_space<vmem>>, %arg3: memref<2x32x128xi32, #tpu.memory_space<vmem>>, %arg4: memref<1x4x2x128xf32, #tpu.memory_space<vmem>>, %arg5: memref<1x4x2x128xf32, #tpu.memory_space<vmem>>, %arg6: memref<1x4x2x128xf32, #tpu.memory_space<vmem>>) attributes {dimension_semantics = [#tpu.dimension_semantics<parallel>, #tpu.dimension_semantics<arbitrary>], iteration_bounds = array<i64: 1, 1>, scalar_prefetch = 0 : i64, scratch_operands = 0 : i64, tpu.core_type = #tpu.core_type<tc>, window_params = [{transform_indices = @transform_0, window_bounds = array<i64: 2, 4, 32, 128>}, {transform_indices = @transform_1, window_bounds = array<i64: 2, 32, 128>}, {transform_indices = @transform_2, window_bounds = array<i64: 1, 4, 2, 128>}, {transform_indices = @transform_3, window_bounds = array<i64: 1, 4, 2, 128>}, {transform_indices = @transform_4, window_bounds = array<i64: 1, 4, 2, 128>}]} {
    %c0_i32 = arith.constant 0 : i32
    %0 = arith.cmpi eq, %arg1, %c0_i32 : i32
    %1 = arith.extui %0 : i1 to i32
    %c0_i32_0 = arith.constant 0 : i32
    %2 = arith.cmpi ne, %1, %c0_i32_0 : i32
    scf.if %2 {
      %cst_95 = arith.constant 0.000000e+00 : f32
      %94 = vector.broadcast %cst_95 : f32 to vector<1x4x2x128xf32>
      %c0_96 = arith.constant 0 : index
      %c0_97 = arith.constant 0 : index
      %c0_98 = arith.constant 0 : index
      %c0_99 = arith.constant 0 : index
      %95 = vector.load %arg4[%c0_96, %c0_97, %c0_98, %c0_99] : memref<1x4x2x128xf32, #tpu.memory_space<vmem>>, vector<1x4x2x128xf32>
      tpu.vector_store %arg4[%c0_96, %c0_97, %c0_98, %c0_99], %94 {strides = array<i32>} : memref<1x4x2x128xf32, #tpu.memory_space<vmem>>, vector<1x4x2x128xf32>,
      %cst_100 = arith.constant 0.000000e+00 : f32
      %96 = vector.broadcast %cst_100 : f32 to vector<1x4x2x128xf32>
      %c0_101 = arith.constant 0 : index
      %c0_102 = arith.constant 0 : index
      %c0_103 = arith.constant 0 : index
      %c0_104 = arith.constant 0 : index
      %97 = vector.load %arg5[%c0_101, %c0_102, %c0_103, %c0_104] : memref<1x4x2x128xf32, #tpu.memory_space<vmem>>, vector<1x4x2x128xf32>
      tpu.vector_store %arg5[%c0_101, %c0_102, %c0_103, %c0_104], %96 {strides = array<i32>} : memref<1x4x2x128xf32, #tpu.memory_space<vmem>>, vector<1x4x2x128xf32>,
      %cst_105 = arith.constant 0.000000e+00 : f32
      %98 = vector.broadcast %cst_105 : f32 to vector<1x4x2x128xf32>
      %c0_106 = arith.constant 0 : index
      %c0_107 = arith.constant 0 : index
      %c0_108 = arith.constant 0 : index
      %c0_109 = arith.constant 0 : index
      %99 = vector.load %arg6[%c0_106, %c0_107, %c0_108, %c0_109] : memref<1x4x2x128xf32, #tpu.memory_space<vmem>>, vector<1x4x2x128xf32>
      tpu.vector_store %arg6[%c0_106, %c0_107, %c0_108, %c0_109], %98 {strides = array<i32>} : memref<1x4x2x128xf32, #tpu.memory_space<vmem>>, vector<1x4x2x128xf32>,
    } else {
    }
    %c0 = arith.constant 0 : index
    %c0_1 = arith.constant 0 : index
    %c0_2 = arith.constant 0 : index
    %3 = vector.load %arg3[%c0, %c0_1, %c0_2] : memref<2x32x128xi32, #tpu.memory_space<vmem>>, vector<2x32x128xi32>
    %c0_3 = arith.constant 0 : index
    %c1 = arith.constant 1 : index
    %c0_4 = arith.constant 0 : index
    %c0_5 = arith.constant 0 : index
    %4 = vector.load %arg2[%c0_3, %c1, %c0_4, %c0_5] : memref<2x4x32x128xf32, #tpu.memory_space<vmem>>, vector<2x1x32x128xf32>
    %5 = vector.shape_cast %4 : vector<2x1x32x128xf32> to vector<2x32x128xf32>
    %c1_i32 = arith.constant 1 : i32
    %6 = vector.broadcast %c1_i32 : i32 to vector<2x32x128xi32>
    %7 = arith.cmpi eq, %3, %6 : vector<2x32x128xi32>
    %c0_6 = arith.constant 0 : index
    %c1_7 = arith.constant 1 : index
    %c0_8 = arith.constant 0 : index
    %c0_9 = arith.constant 0 : index
    %8 = vector.load %arg4[%c0_6, %c1_7, %c0_8, %c0_9] : memref<1x4x2x128xf32, #tpu.memory_space<vmem>>, vector<1x1x2x128xf32>
    %9 = vector.shape_cast %8 : vector<1x1x2x128xf32> to vector<2x128xf32>
    %cst = arith.constant 0.000000e+00 : f32
    %10 = vector.broadcast %cst : f32 to vector<2x32x128xf32>
    %11 = arith.select %7, %5, %10 : vector<2x32x128xi1>, vector<2x32x128xf32>
    %cst_10 = arith.constant dense<0.000000e+00> : vector<2x128xf32>
    %12 = vector.multi_reduction <add>, %11, %cst_10 [1] : vector<2x32x128xf32> to vector<2x128xf32>
    %13 = arith.addf %9, %12 : vector<2x128xf32>
    %c0_11 = arith.constant 0 : index
    %c1_12 = arith.constant 1 : index
    %c0_13 = arith.constant 0 : index
    %c0_14 = arith.constant 0 : index
    %14 = vector.load %arg4[%c0_11, %c1_12, %c0_13, %c0_14] : memref<1x4x2x128xf32, #tpu.memory_space<vmem>>, vector<1x1x2x128xf32>
    %15 = vector.shape_cast %14 : vector<1x1x2x128xf32> to vector<2x128xf32>
    %16 = vector.shape_cast %13 : vector<2x128xf32> to vector<1x1x2x128xf32>
    tpu.vector_store %arg4[%c0_11, %c1_12, %c0_13, %c0_14], %16 {strides = array<i32>} : memref<1x4x2x128xf32, #tpu.memory_space<vmem>>, vector<1x1x2x128xf32>,
    %c0_15 = arith.constant 0 : index
    %c1_16 = arith.constant 1 : index
    %c0_17 = arith.constant 0 : index
    %c0_18 = arith.constant 0 : index
    %17 = vector.load %arg5[%c0_15, %c1_16, %c0_17, %c0_18] : memref<1x4x2x128xf32, #tpu.memory_space<vmem>>, vector<1x1x2x128xf32>
    %18 = vector.shape_cast %17 : vector<1x1x2x128xf32> to vector<2x128xf32>
    %19 = arith.mulf %5, %5 : vector<2x32x128xf32>
    %cst_19 = arith.constant dense<0.000000e+00> : vector<2x128xf32>
    %20 = vector.multi_reduction <add>, %19, %cst_19 [1] : vector<2x32x128xf32> to vector<2x128xf32>
    %21 = arith.addf %18, %20 : vector<2x128xf32>
    %c0_20 = arith.constant 0 : index
    %c1_21 = arith.constant 1 : index
    %c0_22 = arith.constant 0 : index
    %c0_23 = arith.constant 0 : index
    %22 = vector.load %arg5[%c0_20, %c1_21, %c0_22, %c0_23] : memref<1x4x2x128xf32, #tpu.memory_space<vmem>>, vector<1x1x2x128xf32>
    %23 = vector.shape_cast %22 : vector<1x1x2x128xf32> to vector<2x128xf32>
    %24 = vector.shape_cast %21 : vector<2x128xf32> to vector<1x1x2x128xf32>
    tpu.vector_store %arg5[%c0_20, %c1_21, %c0_22, %c0_23], %24 {strides = array<i32>} : memref<1x4x2x128xf32, #tpu.memory_space<vmem>>, vector<1x1x2x128xf32>,
    %c0_24 = arith.constant 0 : index
    %c1_25 = arith.constant 1 : index
    %c0_26 = arith.constant 0 : index
    %c0_27 = arith.constant 0 : index
    %25 = vector.load %arg6[%c0_24, %c1_25, %c0_26, %c0_27] : memref<1x4x2x128xf32, #tpu.memory_space<vmem>>, vector<1x1x2x128xf32>
    %26 = vector.shape_cast %25 : vector<1x1x2x128xf32> to vector<2x128xf32>
    %27 = arith.extui %7 : vector<2x32x128xi1> to vector<2x32x128xi32>
    %28 = arith.sitofp %27 : vector<2x32x128xi32> to vector<2x32x128xf32>
    %cst_28 = arith.constant dense<0.000000e+00> : vector<2x128xf32>
    %29 = vector.multi_reduction <add>, %28, %cst_28 [1] : vector<2x32x128xf32> to vector<2x128xf32>
    %30 = arith.addf %26, %29 : vector<2x128xf32>
    %c0_29 = arith.constant 0 : index
    %c1_30 = arith.constant 1 : index
    %c0_31 = arith.constant 0 : index
    %c0_32 = arith.constant 0 : index
    %31 = vector.load %arg6[%c0_29, %c1_30, %c0_31, %c0_32] : memref<1x4x2x128xf32, #tpu.memory_space<vmem>>, vector<1x1x2x128xf32>
    %32 = vector.shape_cast %31 : vector<1x1x2x128xf32> to vector<2x128xf32>
    %33 = vector.shape_cast %30 : vector<2x128xf32> to vector<1x1x2x128xf32>
    tpu.vector_store %arg6[%c0_29, %c1_30, %c0_31, %c0_32], %33 {strides = array<i32>} : memref<1x4x2x128xf32, #tpu.memory_space<vmem>>, vector<1x1x2x128xf32>,
    %c0_33 = arith.constant 0 : index
    %c2 = arith.constant 2 : index
    %c0_34 = arith.constant 0 : index
    %c0_35 = arith.constant 0 : index
    %34 = vector.load %arg2[%c0_33, %c2, %c0_34, %c0_35] : memref<2x4x32x128xf32, #tpu.memory_space<vmem>>, vector<2x1x32x128xf32>
    %35 = vector.shape_cast %34 : vector<2x1x32x128xf32> to vector<2x32x128xf32>
    %c2_i32 = arith.constant 2 : i32
    %36 = vector.broadcast %c2_i32 : i32 to vector<2x32x128xi32>
    %37 = arith.cmpi eq, %3, %36 : vector<2x32x128xi32>
    %c0_36 = arith.constant 0 : index
    %c2_37 = arith.constant 2 : index
    %c0_38 = arith.constant 0 : index
    %c0_39 = arith.constant 0 : index
    %38 = vector.load %arg4[%c0_36, %c2_37, %c0_38, %c0_39] : memref<1x4x2x128xf32, #tpu.memory_space<vmem>>, vector<1x1x2x128xf32>
    %39 = vector.shape_cast %38 : vector<1x1x2x128xf32> to vector<2x128xf32>
    %cst_40 = arith.constant 0.000000e+00 : f32
    %40 = vector.broadcast %cst_40 : f32 to vector<2x32x128xf32>
    %41 = arith.select %37, %35, %40 : vector<2x32x128xi1>, vector<2x32x128xf32>
    %cst_41 = arith.constant dense<0.000000e+00> : vector<2x128xf32>
    %42 = vector.multi_reduction <add>, %41, %cst_41 [1] : vector<2x32x128xf32> to vector<2x128xf32>
    %43 = arith.addf %39, %42 : vector<2x128xf32>
    %c0_42 = arith.constant 0 : index
    %c2_43 = arith.constant 2 : index
    %c0_44 = arith.constant 0 : index
    %c0_45 = arith.constant 0 : index
    %44 = vector.load %arg4[%c0_42, %c2_43, %c0_44, %c0_45] : memref<1x4x2x128xf32, #tpu.memory_space<vmem>>, vector<1x1x2x128xf32>
    %45 = vector.shape_cast %44 : vector<1x1x2x128xf32> to vector<2x128xf32>
    %46 = vector.shape_cast %43 : vector<2x128xf32> to vector<1x1x2x128xf32>
    tpu.vector_store %arg4[%c0_42, %c2_43, %c0_44, %c0_45], %46 {strides = array<i32>} : memref<1x4x2x128xf32, #tpu.memory_space<vmem>>, vector<1x1x2x128xf32>,
    %c0_46 = arith.constant 0 : index
    %c2_47 = arith.constant 2 : index
    %c0_48 = arith.constant 0 : index
    %c0_49 = arith.constant 0 : index
    %47 = vector.load %arg5[%c0_46, %c2_47, %c0_48, %c0_49] : memref<1x4x2x128xf32, #tpu.memory_space<vmem>>, vector<1x1x2x128xf32>
    %48 = vector.shape_cast %47 : vector<1x1x2x128xf32> to vector<2x128xf32>
    %49 = arith.mulf %35, %35 : vector<2x32x128xf32>
    %cst_50 = arith.constant dense<0.000000e+00> : vector<2x128xf32>
    %50 = vector.multi_reduction <add>, %49, %cst_50 [1] : vector<2x32x128xf32> to vector<2x128xf32>
    %51 = arith.addf %48, %50 : vector<2x128xf32>
    %c0_51 = arith.constant 0 : index
    %c2_52 = arith.constant 2 : index
    %c0_53 = arith.constant 0 : index
    %c0_54 = arith.constant 0 : index
    %52 = vector.load %arg5[%c0_51, %c2_52, %c0_53, %c0_54] : memref<1x4x2x128xf32, #tpu.memory_space<vmem>>, vector<1x1x2x128xf32>
    %53 = vector.shape_cast %52 : vector<1x1x2x128xf32> to vector<2x128xf32>
    %54 = vector.shape_cast %51 : vector<2x128xf32> to vector<1x1x2x128xf32>
    tpu.vector_store %arg5[%c0_51, %c2_52, %c0_53, %c0_54], %54 {strides = array<i32>} : memref<1x4x2x128xf32, #tpu.memory_space<vmem>>, vector<1x1x2x128xf32>,
    %c0_55 = arith.constant 0 : index
    %c2_56 = arith.constant 2 : index
    %c0_57 = arith.constant 0 : index
    %c0_58 = arith.constant 0 : index
    %55 = vector.load %arg6[%c0_55, %c2_56, %c0_57, %c0_58] : memref<1x4x2x128xf32, #tpu.memory_space<vmem>>, vector<1x1x2x128xf32>
    %56 = vector.shape_cast %55 : vector<1x1x2x128xf32> to vector<2x128xf32>
    %57 = arith.extui %37 : vector<2x32x128xi1> to vector<2x32x128xi32>
    %58 = arith.sitofp %57 : vector<2x32x128xi32> to vector<2x32x128xf32>
    %cst_59 = arith.constant dense<0.000000e+00> : vector<2x128xf32>
    %59 = vector.multi_reduction <add>, %58, %cst_59 [1] : vector<2x32x128xf32> to vector<2x128xf32>
    %60 = arith.addf %56, %59 : vector<2x128xf32>
    %c0_60 = arith.constant 0 : index
    %c2_61 = arith.constant 2 : index
    %c0_62 = arith.constant 0 : index
    %c0_63 = arith.constant 0 : index
    %61 = vector.load %arg6[%c0_60, %c2_61, %c0_62, %c0_63] : memref<1x4x2x128xf32, #tpu.memory_space<vmem>>, vector<1x1x2x128xf32>
    %62 = vector.shape_cast %61 : vector<1x1x2x128xf32> to vector<2x128xf32>
    %63 = vector.shape_cast %60 : vector<2x128xf32> to vector<1x1x2x128xf32>
    tpu.vector_store %arg6[%c0_60, %c2_61, %c0_62, %c0_63], %63 {strides = array<i32>} : memref<1x4x2x128xf32, #tpu.memory_space<vmem>>, vector<1x1x2x128xf32>,
    %c0_64 = arith.constant 0 : index
    %c3 = arith.constant 3 : index
    %c0_65 = arith.constant 0 : index
    %c0_66 = arith.constant 0 : index
    %64 = vector.load %arg2[%c0_64, %c3, %c0_65, %c0_66] : memref<2x4x32x128xf32, #tpu.memory_space<vmem>>, vector<2x1x32x128xf32>
    %65 = vector.shape_cast %64 : vector<2x1x32x128xf32> to vector<2x32x128xf32>
    %c3_i32 = arith.constant 3 : i32
    %66 = vector.broadcast %c3_i32 : i32 to vector<2x32x128xi32>
    %67 = arith.cmpi eq, %3, %66 : vector<2x32x128xi32>
    %c0_67 = arith.constant 0 : index
    %c3_68 = arith.constant 3 : index
    %c0_69 = arith.constant 0 : index
    %c0_70 = arith.constant 0 : index
    %68 = vector.load %arg4[%c0_67, %c3_68, %c0_69, %c0_70] : memref<1x4x2x128xf32, #tpu.memory_space<vmem>>, vector<1x1x2x128xf32>
    %69 = vector.shape_cast %68 : vector<1x1x2x128xf32> to vector<2x128xf32>
    %cst_71 = arith.constant 0.000000e+00 : f32
    %70 = vector.broadcast %cst_71 : f32 to vector<2x32x128xf32>
    %71 = arith.select %67, %65, %70 : vector<2x32x128xi1>, vector<2x32x128xf32>
    %cst_72 = arith.constant dense<0.000000e+00> : vector<2x128xf32>
    %72 = vector.multi_reduction <add>, %71, %cst_72 [1] : vector<2x32x128xf32> to vector<2x128xf32>
    %73 = arith.addf %69, %72 : vector<2x128xf32>
    %c0_73 = arith.constant 0 : index
    %c3_74 = arith.constant 3 : index
    %c0_75 = arith.constant 0 : index
    %c0_76 = arith.constant 0 : index
    %74 = vector.load %arg4[%c0_73, %c3_74, %c0_75, %c0_76] : memref<1x4x2x128xf32, #tpu.memory_space<vmem>>, vector<1x1x2x128xf32>
    %75 = vector.shape_cast %74 : vector<1x1x2x128xf32> to vector<2x128xf32>
    %76 = vector.shape_cast %73 : vector<2x128xf32> to vector<1x1x2x128xf32>
    tpu.vector_store %arg4[%c0_73, %c3_74, %c0_75, %c0_76], %76 {strides = array<i32>} : memref<1x4x2x128xf32, #tpu.memory_space<vmem>>, vector<1x1x2x128xf32>,
    %c0_77 = arith.constant 0 : index
    %c3_78 = arith.constant 3 : index
    %c0_79 = arith.constant 0 : index
    %c0_80 = arith.constant 0 : index
    %77 = vector.load %arg5[%c0_77, %c3_78, %c0_79, %c0_80] : memref<1x4x2x128xf32, #tpu.memory_space<vmem>>, vector<1x1x2x128xf32>
    %78 = vector.shape_cast %77 : vector<1x1x2x128xf32> to vector<2x128xf32>
    %79 = arith.mulf %65, %65 : vector<2x32x128xf32>
    %cst_81 = arith.constant dense<0.000000e+00> : vector<2x128xf32>
    %80 = vector.multi_reduction <add>, %79, %cst_81 [1] : vector<2x32x128xf32> to vector<2x128xf32>
    %81 = arith.addf %78, %80 : vector<2x128xf32>
    %c0_82 = arith.constant 0 : index
    %c3_83 = arith.constant 3 : index
    %c0_84 = arith.constant 0 : index
    %c0_85 = arith.constant 0 : index
    %82 = vector.load %arg5[%c0_82, %c3_83, %c0_84, %c0_85] : memref<1x4x2x128xf32, #tpu.memory_space<vmem>>, vector<1x1x2x128xf32>
    %83 = vector.shape_cast %82 : vector<1x1x2x128xf32> to vector<2x128xf32>
    %84 = vector.shape_cast %81 : vector<2x128xf32> to vector<1x1x2x128xf32>
    tpu.vector_store %arg5[%c0_82, %c3_83, %c0_84, %c0_85], %84 {strides = array<i32>} : memref<1x4x2x128xf32, #tpu.memory_space<vmem>>, vector<1x1x2x128xf32>,
    %c0_86 = arith.constant 0 : index
    %c3_87 = arith.constant 3 : index
    %c0_88 = arith.constant 0 : index
    %c0_89 = arith.constant 0 : index
    %85 = vector.load %arg6[%c0_86, %c3_87, %c0_88, %c0_89] : memref<1x4x2x128xf32, #tpu.memory_space<vmem>>, vector<1x1x2x128xf32>
    %86 = vector.shape_cast %85 : vector<1x1x2x128xf32> to vector<2x128xf32>
    %87 = arith.extui %67 : vector<2x32x128xi1> to vector<2x32x128xi32>
    %88 = arith.sitofp %87 : vector<2x32x128xi32> to vector<2x32x128xf32>
    %cst_90 = arith.constant dense<0.000000e+00> : vector<2x128xf32>
    %89 = vector.multi_reduction <add>, %88, %cst_90 [1] : vector<2x32x128xf32> to vector<2x128xf32>
    %90 = arith.addf %86, %89 : vector<2x128xf32>
    %c0_91 = arith.constant 0 : index
    %c3_92 = arith.constant 3 : index
    %c0_93 = arith.constant 0 : index
    %c0_94 = arith.constant 0 : index
    %91 = vector.load %arg6[%c0_91, %c3_92, %c0_93, %c0_94] : memref<1x4x2x128xf32, #tpu.memory_space<vmem>>, vector<1x1x2x128xf32>
    %92 = vector.shape_cast %91 : vector<1x1x2x128xf32> to vector<2x128xf32>
    %93 = vector.shape_cast %90 : vector<2x128xf32> to vector<1x1x2x128xf32>
    tpu.vector_store %arg6[%c0_91, %c3_92, %c0_93, %c0_94], %93 {strides = array<i32>} : memref<1x4x2x128xf32, #tpu.memory_space<vmem>>, vector<1x1x2x128xf32>,
    return
  }
  func.func @transform_0(%arg0: i32, %arg1: i32) -> (i32, i32, i32, i32) {
    %c1_i32 = arith.constant 1 : i32
    %0 = arith.muli %arg0, %c1_i32 : i32
    %1 = arith.addi %0, %arg1 : i32
    %c0_i32 = arith.constant 0 : i32
    %c0_i32_0 = arith.constant 0 : i32
    %c0_i32_1 = arith.constant 0 : i32
    %c0_i32_2 = arith.constant 0 : i32
    return %c0_i32, %c0_i32_0, %1, %c0_i32_1 : i32, i32, i32, i32
  }
  func.func @transform_1(%arg0: i32, %arg1: i32) -> (i32, i32, i32) {
    %c1_i32 = arith.constant 1 : i32
    %0 = arith.muli %arg0, %c1_i32 : i32
    %1 = arith.addi %0, %arg1 : i32
    %c0_i32 = arith.constant 0 : i32
    %c0_i32_0 = arith.constant 0 : i32
    %c0_i32_1 = arith.constant 0 : i32
    return %c0_i32, %1, %c0_i32_0 : i32, i32, i32
  }
  func.func @transform_2(%arg0: i32, %arg1: i32) -> (i32, i32, i32, i32) {
    %c0_i32 = arith.constant 0 : i32
    %c0_i32_0 = arith.constant 0 : i32
    %c0_i32_1 = arith.constant 0 : i32
    %c0_i32_2 = arith.constant 0 : i32
    return %arg0, %c0_i32, %c0_i32_0, %c0_i32_1 : i32, i32, i32, i32
  }
  func.func @transform_3(%arg0: i32, %arg1: i32) -> (i32, i32, i32, i32) {
    %c0_i32 = arith.constant 0 : i32
    %c0_i32_0 = arith.constant 0 : i32
    %c0_i32_1 = arith.constant 0 : i32
    %c0_i32_2 = arith.constant 0 : i32
    return %arg0, %c0_i32, %c0_i32_0, %c0_i32_1 : i32, i32, i32, i32
  }
  func.func @transform_4(%arg0: i32, %arg1: i32) -> (i32, i32, i32, i32) {
    %c0_i32 = arith.constant 0 : i32
    %c0_i32_0 = arith.constant 0 : i32
    %c0_i32_1 = arith.constant 0 : i32
    %c0_i32_2 = arith.constant 0 : i32
    return %arg0, %c0_i32, %c0_i32_0, %c0_i32_1 : i32, i32, i32, i32
  }
}

</mosaic_0001>

<llo_original>
// kernel: tpu_custom_call.1
$region0: #{tpu_custom_call.1}
  #allocation0 [shape = 'u32[]', space=smem, size = 0x4, offset = 0x4, fixed_abs, tag = 'smem constant byte address 0x4 - core index']
  #allocation1 [shape = 'u32[144,128]{1,0:T(1,128)}', space=vmem, size = 0x12000, scoped, tag = 'internal scratch']
  %s0 = inlined_call_operand.hbm [shape: f32[2,4,32,128], index: 0, kind: input, shape index: {}]
  %s1 = inlined_call_operand.hbm [shape: s32[2,32,128], index: 1, kind: input, shape index: {}]
  %s2 = inlined_call_operand.hbm [shape: f32[1,4,2,128], index: 2, kind: output, shape index: {0}]
  %s3 = inlined_call_operand.hbm [shape: f32[1,4,2,128], index: 3, kind: output, shape index: {1}]
  %s4 = inlined_call_operand.hbm [shape: f32[1,4,2,128], index: 4, kind: output, shape index: {2}]
  %5 = xla_tuple %s2, %s3, %s4
  %s6 = sld [smem:[#allocation0]]
  $region46: #{tpu_custom_call.1} parent=0
    _
  %s8 = ssub.s32 1, %s6
  %s9 = scalar_select 0, %s8, %s6
  $region1: #{tpu_custom_call.1} parent=0
    #allocation2 [shape = 'u8[131072]{0}', space=vmem, size = 0x20000, scoped, tag = 'input window, operand 0, single buffered']
    #allocation3 [shape = 's32[1]{0}', space=sflag, size = 0x4, scoped, tag = 'scoped memory for tpu_custom_call.1']
    #allocation4 [shape = 's32[1]{0}', space=sflag, size = 0x4, scoped, tag = 'scoped memory for tpu_custom_call.1']
    #allocation5 [shape = 'u8[32768]{0}', space=vmem, size = 0x8000, scoped, tag = 'input window, operand 1, single buffered']
    #allocation6 [shape = 's32[1]{0}', space=sflag, size = 0x4, scoped, tag = 'scoped memory for tpu_custom_call.1']
    #allocation7 [shape = 'u8[4096]{0}', space=vmem, size = 0x1000, scoped, tag = 'output window, operand 0, single buffered']
    #allocation8 [shape = 'u8[4096]{0}', space=vmem, size = 0x1000, scoped, tag = 'output window, operand 1, single buffered']
    #allocation9 [shape = 's32[1]{0}', space=sflag, size = 0x4, scoped, tag = 'scoped memory for tpu_custom_call.1']
    #allocation10 [shape = 'u8[4096]{0}', space=vmem, size = 0x1000, scoped, tag = 'output window, operand 2, single buffered']
    %10 = vsyncpa [#allocation3], 0
    %11 = vsyncpa [#allocation6], 0
    %12 = vsyncpa [#allocation4], 0
    %13 = vsyncpa [#allocation9], 0
    // Predicated region
    $region2: #{tpu_custom_call.1} parent=1 // pred_check
      _
    $region3: #{tpu_custom_call.1} parent=1 // pred_check_branch
      %15 = sbr.rel (0) target = $region5
    $region4: #{tpu_custom_call.1} parent=1 // pred_region
      %s16 = sadd.s32 0, 0
      %s17 = smul.u32 4, %s16
      %s19 = ssub.s32 4096, 4096
      %20 = vsyncadd [#allocation3], %s19
      %s21 = smul.addr %s17, 128
      %s22 = scalar_lea.hbm %s0, %s21
      %s23 = sshll.u32 [#allocation2], 4
      %s24 = int_to_ptr.vmem [resolvable:$true] %s23
      %29 = dma.hbm_to_vmem [thread:$0]  %s22, 4096, %s24, [#allocation3], 128, 128, 8
    $region5: #{tpu_custom_call.1} parent=1 // pred_fallthru
      _
    // Predicated region
    $region6: #{tpu_custom_call.1} parent=1 // pred_check
      _
    $region7: #{tpu_custom_call.1} parent=1 // pred_check_branch
      %31 = sbr.rel (0) target = $region9
    $region8: #{tpu_custom_call.1} parent=1 // pred_region
      %s32 = sadd.s32 0, 0
      %s33 = smul.u32 4, %s32
      %s35 = ssub.s32 1024, 1024
      %36 = vsyncadd [#allocation6], %s35
      %s37 = smul.addr %s33, 128
      %s38 = scalar_lea.hbm %s1, %s37
      %s39 = sshll.u32 [#allocation5], 4
      %s40 = int_to_ptr.vmem [resolvable:$true] %s39
      %45 = dma.hbm_to_vmem [thread:$0]  %s38, 1024, %s40, [#allocation6], 128, 128, 8
    $region9: #{tpu_custom_call.1} parent=1 // pred_fallthru
      _
    // Predicated region
    $region10: #{tpu_custom_call.1} parent=1 // pred_check
      _
    $region11: #{tpu_custom_call.1} parent=1 // pred_check_branch
      %47 = sbr.rel (0) target = $region13
    $region12: #{tpu_custom_call.1} parent=1 // pred_region
      %48 = dma.done [#allocation3], 4096
    $region13: #{tpu_custom_call.1} parent=1 // pred_fallthru
      _
    // Predicated region
    $region14: #{tpu_custom_call.1} parent=1 // pred_check
      _
    $region15: #{tpu_custom_call.1} parent=1 // pred_check_branch
      %50 = sbr.rel (0) target = $region17
    $region16: #{tpu_custom_call.1} parent=1 // pred_region
      %51 = dma.done [#allocation6], 1024
    $region17: #{tpu_custom_call.1} parent=1 // pred_fallthru
      _
    %s52 = sadd.s32 0, 0
    %s53 = smul.u32 4, %s52
    %s54 = sadd.s32 0, 0
    %s55 = smul.u32 4, %s54
    %p56 = scmp.eq.s32.totalorder 0, 0
    // Predicated region
    $region18: #{tpu_custom_call.1} parent=1 // pred_check
      %p57 = pneg %p56
    $region19: #{tpu_custom_call.1} parent=1 // pred_check_branch
      %59 = sbr.rel (%p57) target = $region21
    $region20: #{tpu_custom_call.1} parent=1 // pred_region
      %60 = vst [vmem:[#allocation7] sm:$0x3] 0.0
      %61 = vst [vmem:[#allocation7 + $0x2] sm:$0x3] 0.0
      %62 = vst [vmem:[#allocation7 + $0x4] sm:$0x3] 0.0
      %63 = vst [vmem:[#allocation7 + $0x6] sm:$0x3] 0.0
      %64 = vst [vmem:[#allocation8] sm:$0x3] 0.0
      %65 = vst [vmem:[#allocation8 + $0x2] sm:$0x3] 0.0
      %66 = vst [vmem:[#allocation8 + $0x4] sm:$0x3] 0.0
      %67 = vst [vmem:[#allocation8 + $0x6] sm:$0x3] 0.0
      %68 = vst [vmem:[#allocation10] sm:$0x3] 0.0
      %69 = vst [vmem:[#allocation10 + $0x2] sm:$0x3] 0.0
      %70 = vst [vmem:[#allocation10 + $0x4] sm:$0x3] 0.0
      %71 = vst [vmem:[#allocation10 + $0x6] sm:$0x3] 0.0
    $region21: #{tpu_custom_call.1} parent=1 // pred_fallthru
      _
    %v72 = vld [vmem:[#allocation5] sm:$0xff]
    %v73 = vld [vmem:[#allocation5 + $0x8] sm:$0xff]
    %v74 = vld [vmem:[#allocation5 + $0x10] sm:$0xff]
    %v75 = vld [vmem:[#allocation5 + $0x18] sm:$0xff]
    %v76 = vld [vmem:[#allocation5 + $0x20] sm:$0xff]
    %v77 = vld [vmem:[#allocation5 + $0x28] sm:$0xff]
    %v78 = vld [vmem:[#allocation5 + $0x30] sm:$0xff]
    %v79 = vld [vmem:[#allocation5 + $0x38] sm:$0xff]
    %s80 = scalar_lea.vmem [#allocation2], 32
    %v81 = vld [vmem:[%s80] sm:$0xff]
    %v82 = vld [vmem:[%s80 + $0x8] sm:$0xff]
    %v83 = vld [vmem:[%s80 + $0x10] sm:$0xff]
    %v84 = vld [vmem:[%s80 + $0x18] sm:$0xff]
    %v85 = vld [vmem:[%s80 + $0x80] sm:$0xff]
    %v86 = vld [vmem:[%s80 + $0x88] sm:$0xff]
    %v87 = vld [vmem:[%s80 + $0x90] sm:$0xff]
    %v88 = vld [vmem:[%s80 + $0x98] sm:$0xff]
    %vm89 = vcmp.eq.s32.totalorder %v72, 1
    %vm90 = vcmp.eq.s32.totalorder %v73, 1
    %vm91 = vcmp.eq.s32.totalorder %v74, 1
    %vm92 = vcmp.eq.s32.totalorder %v75, 1
    %vm93 = vcmp.eq.s32.totalorder %v76, 1
    %vm94 = vcmp.eq.s32.totalorder %v77, 1
    %vm95 = vcmp.eq.s32.totalorder %v78, 1
    %vm96 = vcmp.eq.s32.totalorder %v79, 1
    %s97 = scalar_lea.vmem [#allocation7], 2
    %v98 = vld [vmem:[%s97] sm:$0x3]
    %v99 = vsel %vm89, %v81, 0.0
    %v100 = vsel %vm90, %v82, 0.0
    %v101 = vsel %vm91, %v83, 0.0
    %v102 = vsel %vm92, %v84, 0.0
    %v103 = vsel %vm93, %v85, 0.0
    %v104 = vsel %vm94, %v86, 0.0
    %v105 = vsel %vm95, %v87, 0.0
    %v106 = vsel %vm96, %v88, 0.0
    %v107 = vadd.f32 %v99, %v100
    %v108 = vadd.f32 %v107, %v101
    %v109 = vadd.f32 %v108, %v102
    %v110 = vrot.slane %v109, 4
    %v111 = vadd.f32 %v109, %v110
    %v112 = vrot.slane %v111, 2
    %v113 = vadd.f32 %v111, %v112
    %v114 = vrot.slane %v113, 1
    %v115 = vadd.f32 %v113, %v114
    %v116 = vadd.f32 %v103, %v104
    %v117 = vadd.f32 %v116, %v105
    %v118 = vadd.f32 %v117, %v106
    %v119 = vrot.slane %v118, 4
    %v120 = vadd.f32 %v118, %v119
    %v121 = vrot.slane %v120, 2
    %v122 = vadd.f32 %v120, %v121
    %v123 = vrot.slane %v122, 1
    %v124 = vadd.f32 %v122, %v123
    %vm127 = vcmask 1041409
    %v128 = vsel %vm127, %v124, %v115
    %v130 = vadd.f32 %v98, %v128
    %131 = vst [vmem:[%s97] sm:$0x3] %v130
    %s132 = scalar_lea.vmem [#allocation8], 2
    %v133 = vld [vmem:[%s132] sm:$0x3]
    %v134 = vmul.f32 %v81, %v81
    %v135 = vmul.f32 %v82, %v82
    %v136 = vmul.f32 %v83, %v83
    %v137 = vmul.f32 %v84, %v84
    %v138 = vmul.f32 %v85, %v85
    %v139 = vmul.f32 %v86, %v86
    %v140 = vmul.f32 %v87, %v87
    %v141 = vmul.f32 %v88, %v88
    %v142 = vadd.f32 %v134, %v135
    %v143 = vadd.f32 %v142, %v136
    %v144 = vadd.f32 %v143, %v137
    %v145 = vrot.slane %v144, 4
    %v146 = vadd.f32 %v144, %v145
    %v147 = vrot.slane %v146, 2
    %v148 = vadd.f32 %v146, %v147
    %v149 = vrot.slane %v148, 1
    %v150 = vadd.f32 %v148, %v149
    %v151 = vadd.f32 %v138, %v139
    %v152 = vadd.f32 %v151, %v140
    %v153 = vadd.f32 %v152, %v141
    %v154 = vrot.slane %v153, 4
    %v155 = vadd.f32 %v153, %v154
    %v156 = vrot.slane %v155, 2
    %v157 = vadd.f32 %v155, %v156
    %v158 = vrot.slane %v157, 1
    %v159 = vadd.f32 %v157, %v158
    %v162 = vsel %vm127, %v159, %v150
    %v164 = vadd.f32 %v133, %v162
    %165 = vst [vmem:[%s132] sm:$0x3] %v164
    %s166 = scalar_lea.vmem [#allocation10], 2
    %v167 = vld [vmem:[%s166] sm:$0x3]
    %v168 = vsel %vm89, 1, 0
    %v169 = vsel %vm90, 1, 0
    %v170 = vsel %vm91, 1, 0
    %v171 = vsel %vm92, 1, 0
    %v172 = vsel %vm93, 1, 0
    %v173 = vsel %vm94, 1, 0
    %v174 = vsel %vm95, 1, 0
    %v175 = vsel %vm96, 1, 0
    %v176 = vcvt.s32.f32 %v168
    %v177 = vcvt.s32.f32 %v169
    %v178 = vcvt.s32.f32 %v170
    %v179 = vcvt.s32.f32 %v171
    %v180 = vcvt.s32.f32 %v172
    %v181 = vcvt.s32.f32 %v173
    %v182 = vcvt.s32.f32 %v174
    %v183 = vcvt.s32.f32 %v175
    %v184 = vadd.f32 %v176, %v177
    %v185 = vadd.f32 %v184, %v178
    %v186 = vadd.f32 %v185, %v179
    %v187 = vrot.slane %v186, 4
    %v188 = vadd.f32 %v186, %v187
    %v189 = vrot.slane %v188, 2
    %v190 = vadd.f32 %v188, %v189
    %v191 = vrot.slane %v190, 1
    %v192 = vadd.f32 %v190, %v191
    %v193 = vadd.f32 %v180, %v181
    %v194 = vadd.f32 %v193, %v182
    %v195 = vadd.f32 %v194, %v183
    %v196 = vrot.slane %v195, 4
    %v197 = vadd.f32 %v195, %v196
    %v198 = vrot.slane %v197, 2
    %v199 = vadd.f32 %v197, %v198
    %v200 = vrot.slane %v199, 1
    %v201 = vadd.f32 %v199, %v200
    %v204 = vsel %vm127, %v201, %v192
    %v206 = vadd.f32 %v167, %v204
    %207 = vst [vmem:[%s166] sm:$0x3] %v206
    %s208 = scalar_lea.vmem [#allocation2], 64
    %v209 = vld [vmem:[%s208] sm:$0xff]
    %v210 = vld [vmem:[%s208 + $0x8] sm:$0xff]
    %v211 = vld [vmem:[%s208 + $0x10] sm:$0xff]
    %v212 = vld [vmem:[%s208 + $0x18] sm:$0xff]
    %v213 = vld [vmem:[%s208 + $0x80] sm:$0xff]
    %v214 = vld [vmem:[%s208 + $0x88] sm:$0xff]
    %v215 = vld [vmem:[%s208 + $0x90] sm:$0xff]
    %v216 = vld [vmem:[%s208 + $0x98] sm:$0xff]
    %vm217 = vcmp.eq.s32.totalorder %v72, 2
    %vm218 = vcmp.eq.s32.totalorder %v73, 2
    %vm219 = vcmp.eq.s32.totalorder %v74, 2
    %vm220 = vcmp.eq.s32.totalorder %v75, 2
    %vm221 = vcmp.eq.s32.totalorder %v76, 2
    %vm222 = vcmp.eq.s32.totalorder %v77, 2
    %vm223 = vcmp.eq.s32.totalorder %v78, 2
    %vm224 = vcmp.eq.s32.totalorder %v79, 2
    %s225 = scalar_lea.vmem [#allocation7], 4
    %v226 = vld [vmem:[%s225] sm:$0x3]
    %v227 = vsel %vm217, %v209, 0.0
    %v228 = vsel %vm218, %v210, 0.0
    %v229 = vsel %vm219, %v211, 0.0
    %v230 = vsel %vm220, %v212, 0.0
    %v231 = vsel %vm221, %v213, 0.0
    %v232 = vsel %vm222, %v214, 0.0
    %v233 = vsel %vm223, %v215, 0.0
    %v234 = vsel %vm224, %v216, 0.0
    %v235 = vadd.f32 %v227, %v228
    %v236 = vadd.f32 %v235, %v229
    %v237 = vadd.f32 %v236, %v230
    %v238 = vrot.slane %v237, 4
    %v239 = vadd.f32 %v237, %v238
    %v240 = vrot.slane %v239, 2
    %v241 = vadd.f32 %v239, %v240
    %v242 = vrot.slane %v241, 1
    %v243 = vadd.f32 %v241, %v242
    %v244 = vadd.f32 %v231, %v232
    %v245 = vadd.f32 %v244, %v233
    %v246 = vadd.f32 %v245, %v234
    %v247 = vrot.slane %v246, 4
    %v248 = vadd.f32 %v246, %v247
    %v249 = vrot.slane %v248, 2
    %v250 = vadd.f32 %v248, %v249
    %v251 = vrot.slane %v250, 1
    %v252 = vadd.f32 %v250, %v251
    %v255 = vsel %vm127, %v252, %v243
    %v257 = vadd.f32 %v226, %v255
    %258 = vst [vmem:[%s225] sm:$0x3] %v257
    %s259 = scalar_lea.vmem [#allocation8], 4
    %v260 = vld [vmem:[%s259] sm:$0x3]
    %v261 = vmul.f32 %v209, %v209
    %v262 = vmul.f32 %v210, %v210
    %v263 = vmul.f32 %v211, %v211
    %v264 = vmul.f32 %v212, %v212
    %v265 = vmul.f32 %v213, %v213
    %v266 = vmul.f32 %v214, %v214
    %v267 = vmul.f32 %v215, %v215
    %v268 = vmul.f32 %v216, %v216
    %v269 = vadd.f32 %v261, %v262
    %v270 = vadd.f32 %v269, %v263
    %v271 = vadd.f32 %v270, %v264
    %v272 = vrot.slane %v271, 4
    %v273 = vadd.f32 %v271, %v272
    %v274 = vrot.slane %v273, 2
    %v275 = vadd.f32 %v273, %v274
    %v276 = vrot.slane %v275, 1
    %v277 = vadd.f32 %v275, %v276
    %v278 = vadd.f32 %v265, %v266
    %v279 = vadd.f32 %v278, %v267
    %v280 = vadd.f32 %v279, %v268
    %v281 = vrot.slane %v280, 4
    %v282 = vadd.f32 %v280, %v281
    %v283 = vrot.slane %v282, 2
    %v284 = vadd.f32 %v282, %v283
    %v285 = vrot.slane %v284, 1
    %v286 = vadd.f32 %v284, %v285
    %v289 = vsel %vm127, %v286, %v277
    %v291 = vadd.f32 %v260, %v289
    %292 = vst [vmem:[%s259] sm:$0x3] %v291
    %s293 = scalar_lea.vmem [#allocation10], 4
    %v294 = vld [vmem:[%s293] sm:$0x3]
    %v295 = vsel %vm217, 1, 0
    %v296 = vsel %vm218, 1, 0
    %v297 = vsel %vm219, 1, 0
    %v298 = vsel %vm220, 1, 0
    %v299 = vsel %vm221, 1, 0
    %v300 = vsel %vm222, 1, 0
    %v301 = vsel %vm223, 1, 0
    %v302 = vsel %vm224, 1, 0
    %v303 = vcvt.s32.f32 %v295
    %v304 = vcvt.s32.f32 %v296
    %v305 = vcvt.s32.f32 %v297
    %v306 = vcvt.s32.f32 %v298
    %v307 = vcvt.s32.f32 %v299
    %v308 = vcvt.s32.f32 %v300
    %v309 = vcvt.s32.f32 %v301
    %v310 = vcvt.s32.f32 %v302
    %v311 = vadd.f32 %v303, %v304
    %v312 = vadd.f32 %v311, %v305
    %v313 = vadd.f32 %v312, %v306
    %v314 = vrot.slane %v313, 4
    %v315 = vadd.f32 %v313, %v314
    %v316 = vrot.slane %v315, 2
    %v317 = vadd.f32 %v315, %v316
    %v318 = vrot.slane %v317, 1
    %v319 = vadd.f32 %v317, %v318
    %v320 = vadd.f32 %v307, %v308
    %v321 = vadd.f32 %v320, %v309
    %v322 = vadd.f32 %v321, %v310
    %v323 = vrot.slane %v322, 4
    %v324 = vadd.f32 %v322, %v323
    %v325 = vrot.slane %v324, 2
    %v326 = vadd.f32 %v324, %v325
    %v327 = vrot.slane %v326, 1
    %v328 = vadd.f32 %v326, %v327
    %v331 = vsel %vm127, %v328, %v319
    %v333 = vadd.f32 %v294, %v331
    %334 = vst [vmem:[%s293] sm:$0x3] %v333
    %s335 = scalar_lea.vmem [#allocation2], 96
    %v336 = vld [vmem:[%s335] sm:$0xff]
    %v337 = vld [vmem:[%s335 + $0x8] sm:$0xff]
    %v338 = vld [vmem:[%s335 + $0x10] sm:$0xff]
    %v339 = vld [vmem:[%s335 + $0x18] sm:$0xff]
    %v340 = vld [vmem:[%s335 + $0x80] sm:$0xff]
    %v341 = vld [vmem:[%s335 + $0x88] sm:$0xff]
    %v342 = vld [vmem:[%s335 + $0x90] sm:$0xff]
    %v343 = vld [vmem:[%s335 + $0x98] sm:$0xff]
    %vm344 = vcmp.eq.s32.totalorder %v72, 3
    %vm345 = vcmp.eq.s32.totalorder %v73, 3
    %vm346 = vcmp.eq.s32.totalorder %v74, 3
    %vm347 = vcmp.eq.s32.totalorder %v75, 3
    %vm348 = vcmp.eq.s32.totalorder %v76, 3
    %vm349 = vcmp.eq.s32.totalorder %v77, 3
    %vm350 = vcmp.eq.s32.totalorder %v78, 3
    %vm351 = vcmp.eq.s32.totalorder %v79, 3
    %s352 = scalar_lea.vmem [#allocation7], 6
    %v353 = vld [vmem:[%s352] sm:$0x3]
    %v354 = vsel %vm344, %v336, 0.0
    %v355 = vsel %vm345, %v337, 0.0
    %v356 = vsel %vm346, %v338, 0.0
    %v357 = vsel %vm347, %v339, 0.0
    %v358 = vsel %vm348, %v340, 0.0
    %v359 = vsel %vm349, %v341, 0.0
    %v360 = vsel %vm350, %v342, 0.0
    %v361 = vsel %vm351, %v343, 0.0
    %v362 = vadd.f32 %v354, %v355
    %v363 = vadd.f32 %v362, %v356
    %v364 = vadd.f32 %v363, %v357
    %v365 = vrot.slane %v364, 4
    %v366 = vadd.f32 %v364, %v365
    %v367 = vrot.slane %v366, 2
    %v368 = vadd.f32 %v366, %v367
    %v369 = vrot.slane %v368, 1
    %v370 = vadd.f32 %v368, %v369
    %v371 = vadd.f32 %v358, %v359
    %v372 = vadd.f32 %v371, %v360
    %v373 = vadd.f32 %v372, %v361
    %v374 = vrot.slane %v373, 4
    %v375 = vadd.f32 %v373, %v374
    %v376 = vrot.slane %v375, 2
    %v377 = vadd.f32 %v375, %v376
    %v378 = vrot.slane %v377, 1
    %v379 = vadd.f32 %v377, %v378
    %v382 = vsel %vm127, %v379, %v370
    %v384 = vadd.f32 %v353, %v382
    %385 = vst [vmem:[%s352] sm:$0x3] %v384
    %s386 = scalar_lea.vmem [#allocation8], 6
    %v387 = vld [vmem:[%s386] sm:$0x3]
    %v388 = vmul.f32 %v336, %v336
    %v389 = vmul.f32 %v337, %v337
    %v390 = vmul.f32 %v338, %v338
    %v391 = vmul.f32 %v339, %v339
    %v392 = vmul.f32 %v340, %v340
    %v393 = vmul.f32 %v341, %v341
    %v394 = vmul.f32 %v342, %v342
    %v395 = vmul.f32 %v343, %v343
    %v396 = vadd.f32 %v388, %v389
    %v397 = vadd.f32 %v396, %v390
    %v398 = vadd.f32 %v397, %v391
    %v399 = vrot.slane %v398, 4
    %v400 = vadd.f32 %v398, %v399
    %v401 = vrot.slane %v400, 2
    %v402 = vadd.f32 %v400, %v401
    %v403 = vrot.slane %v402, 1
    %v404 = vadd.f32 %v402, %v403
    %v405 = vadd.f32 %v392, %v393
    %v406 = vadd.f32 %v405, %v394
    %v407 = vadd.f32 %v406, %v395
    %v408 = vrot.slane %v407, 4
    %v409 = vadd.f32 %v407, %v408
    %v410 = vrot.slane %v409, 2
    %v411 = vadd.f32 %v409, %v410
    %v412 = vrot.slane %v411, 1
    %v413 = vadd.f32 %v411, %v412
    %v416 = vsel %vm127, %v413, %v404
    %v418 = vadd.f32 %v387, %v416
    %419 = vst [vmem:[%s386] sm:$0x3] %v418
    %s420 = scalar_lea.vmem [#allocation10], 6
    %v421 = vld [vmem:[%s420] sm:$0x3]
    %v422 = vsel %vm344, 1, 0
    %v423 = vsel %vm345, 1, 0
    %v424 = vsel %vm346, 1, 0
    %v425 = vsel %vm347, 1, 0
    %v426 = vsel %vm348, 1, 0
    %v427 = vsel %vm349, 1, 0
    %v428 = vsel %vm350, 1, 0
    %v429 = vsel %vm351, 1, 0
    %v430 = vcvt.s32.f32 %v422
    %v431 = vcvt.s32.f32 %v423
    %v432 = vcvt.s32.f32 %v424
    %v433 = vcvt.s32.f32 %v425
    %v434 = vcvt.s32.f32 %v426
    %v435 = vcvt.s32.f32 %v427
    %v436 = vcvt.s32.f32 %v428
    %v437 = vcvt.s32.f32 %v429
    %v438 = vadd.f32 %v430, %v431
    %v439 = vadd.f32 %v438, %v432
    %v440 = vadd.f32 %v439, %v433
    %v441 = vrot.slane %v440, 4
    %v442 = vadd.f32 %v440, %v441
    %v443 = vrot.slane %v442, 2
    %v444 = vadd.f32 %v442, %v443
    %v445 = vrot.slane %v444, 1
    %v446 = vadd.f32 %v444, %v445
    %v447 = vadd.f32 %v434, %v435
    %v448 = vadd.f32 %v447, %v436
    %v449 = vadd.f32 %v448, %v437
    %v450 = vrot.slane %v449, 4
    %v451 = vadd.f32 %v449, %v450
    %v452 = vrot.slane %v451, 2
    %v453 = vadd.f32 %v451, %v452
    %v454 = vrot.slane %v453, 1
    %v455 = vadd.f32 %v453, %v454
    %v458 = vsel %vm127, %v455, %v446
    %v460 = vadd.f32 %v421, %v458
    %461 = vst [vmem:[%s420] sm:$0x3] %v460
    // Predicated region
    $region22: #{tpu_custom_call.1} parent=1 // pred_check
      _
    $region23: #{tpu_custom_call.1} parent=1 // pred_check_branch
      %463 = sbr.rel (0) target = $region25
    $region24: #{tpu_custom_call.1} parent=1 // pred_region
      %s465 = ssub.s32 128, 128
      %466 = vsyncadd [#allocation4], %s465
      %s467 = sshll.u32 [#allocation7], 4
      %s468 = int_to_ptr.vmem [resolvable:$true] %s467
      %473 = dma.vmem_to_hbm [thread:$0]  %s468, 128, %s2, [#allocation4], 32, 32, 2
    $region25: #{tpu_custom_call.1} parent=1 // pred_fallthru
      _
    // Predicated region
    $region26: #{tpu_custom_call.1} parent=1 // pred_check
      _
    $region27: #{tpu_custom_call.1} parent=1 // pred_check_branch
      %475 = sbr.rel (0) target = $region29
    $region28: #{tpu_custom_call.1} parent=1 // pred_region
      %s477 = ssub.s32 128, 128
      %478 = vsyncadd [#allocation9], %s477
      %s479 = sshll.u32 [#allocation8], 4
      %s480 = int_to_ptr.vmem [resolvable:$true] %s479
      %485 = dma.vmem_to_hbm [thread:$0]  %s480, 128, %s3, [#allocation9], 32, 32, 2
    $region29: #{tpu_custom_call.1} parent=1 // pred_fallthru
      _
    // Predicated region
    $region30: #{tpu_custom_call.1} parent=1 // pred_check
      _
    $region31: #{tpu_custom_call.1} parent=1 // pred_check_branch
      %487 = sbr.rel (0) target = $region33
    $region32: #{tpu_custom_call.1} parent=1 // pred_region
      %s489 = ssub.s32 128, 128
      %490 = vsyncadd [#allocation9], %s489
      %s491 = sshll.u32 [#allocation10], 4
      %s492 = int_to_ptr.vmem [resolvable:$true] %s491
      %497 = dma.vmem_to_hbm [thread:$0]  %s492, 128, %s4, [#allocation9], 32, 32, 2
    $region33: #{tpu_custom_call.1} parent=1 // pred_fallthru
      _
    // Predicated region
    $region34: #{tpu_custom_call.1} parent=1 // pred_check
      _
    $region35: #{tpu_custom_call.1} parent=1 // pred_check_branch
      %499 = sbr.rel (0) target = $region37
    $region36: #{tpu_custom_call.1} parent=1 // pred_region
      %500 = dma.done [#allocation4], 128
    $region37: #{tpu_custom_call.1} parent=1 // pred_fallthru
      _
    // Predicated region
    $region38: #{tpu_custom_call.1} parent=1 // pred_check
      _
    $region39: #{tpu_custom_call.1} parent=1 // pred_check_branch
      %502 = sbr.rel (0) target = $region41
    $region40: #{tpu_custom_call.1} parent=1 // pred_region
      %503 = dma.done [#allocation9], 128
    $region41: #{tpu_custom_call.1} parent=1 // pred_fallthru
      _
    // Predicated region
    $region42: #{tpu_custom_call.1} parent=1 // pred_check
      _
    $region43: #{tpu_custom_call.1} parent=1 // pred_check_branch
      %505 = sbr.rel (0) target = $region45
    $region44: #{tpu_custom_call.1} parent=1 // pred_region
      %506 = dma.done [#allocation9], 128
    $region45: #{tpu_custom_call.1} parent=1 // pred_fallthru
      _
    %507 = vsyncpa [#allocation3], 1
    %508 = vsyncpa [#allocation6], 1
    %509 = vsyncpa [#allocation4], 1
    %510 = vsyncpa [#allocation9], 1

</llo_original>
